<compile_context>
chip_gen: v5e
topology: v5e:2x2
jax: 0.10.0
libtpu: 0.0.40
codegen_flags: <defaults>
</compile_context>

<pallas_src>
import functools

import jax
import jax.numpy as jnp
from jax import lax
from jax.experimental import pallas as pl
from jax.experimental.pallas import tpu as pltpu

LEAK = 0.05
EPS = 1e-5


def basic_block_kernel(x_ref, w1_ref, s1_ref, t1_ref, w2_ref, s2_ref, t2_ref,
                       mask_ref, o_ref, patch_ref, *, H, W):
    """One batch element per grid step (grid axis is 'parallel' -> megacore).

    x_ref    : (1, C, H*W)   input plane, lane-dense (spatial in lanes)
    w1_ref   : (Co, 9*C)     conv1 im2col weights, column index = t*C + ci
    w2_ref   : (Co, 9*Co)    conv2 im2col weights
    s*_ref   : (Co, 1)       folded (conv-bias + BN) per-channel scale
    t*_ref   : (Co, 1)       folded (conv-bias + BN) per-channel shift
    mask_ref : (9, H*W)      per-tap validity masks (zero-padding emulation)
    o_ref    : (1, Co, H*W)
    patch_ref: (9*C, H*W)    VMEM scratch holding the im2col patches
    """
    HW = H * W
    x = x_ref[0]                                   # (C, HW), lane-dense
    C = x.shape[0]
    Co = o_ref.shape[1]

    def build_patches(src, nch):
        # im2col: patch[t*nch + c, q] = src[c, q + off_t] if in-bounds else 0.
        # The lane roll wraps across row / batch boundaries; mask_t zeroes
        # exactly those wrapped positions, reproducing zero padding=1.
        for t in range(9):
            dh, dw = t // 3, t % 3
            off = (dh - 1) * W + (dw - 1)
            if off == 0:
                shifted = src
            else:
                shifted = jnp.roll(src, (-off) % HW, axis=1)   # lane rotation
            patch_ref[t * nch:(t + 1) * nch, :] = shifted * mask_ref[t:t + 1, :]

    # ---- conv1 (3x3, pad 1) as ONE im2col matmul + folded bias/BN1 + LReLU --
    build_patches(x, C)
    y = jnp.dot(w1_ref[...], patch_ref[...],
                preferred_element_type=jnp.float32)            # (Co, HW)
    y = y * s1_ref[...] + t1_ref[...]
    y = jnp.where(y >= 0, y, LEAK * y)

    # ---- conv2 (3x3, pad 1) + folded bias/BN2 + residual + final LReLU ------
    build_patches(y, Co)
    y2 = jnp.dot(w2_ref[...], patch_ref[...],
                 preferred_element_type=jnp.float32)           # (Co, HW)
    y2 = y2 * s2_ref[...] + t2_ref[...]
    out = y2 + x                                               # residual add
    o_ref[0] = jnp.where(out >= 0, out, LEAK * out).astype(o_ref.dtype)


def basic_block_forward(x_nchw, params):
    """Pallas implementation of BasicBlock.forward (downsample=False, eval BN)."""
    N, C, H, W = x_nchw.shape
    HW = H * W
    Co = params["w1"].shape[-1]
    assert C == Co, "downsample=False requires input_dim == output_dim"

    # NCHW -> (N, C, H*W) is a pure reshape (no transpose, no pad, single copy)
    x = x_nchw.astype(jnp.float32).reshape(N, C, HW)

    # Fold conv bias + BatchNorm (inference, running stats) into scale/shift.
    s1 = params["gamma1"] / jnp.sqrt(params["var1"] + EPS)
    t1 = params["beta1"] + s1 * (params["b1"] - params["mean1"])
    s2 = params["gamma2"] / jnp.sqrt(params["var2"] + EPS)
    t2 = params["beta2"] + s2 * (params["b2"] - params["mean2"])

    # im2col weight matrices: Wmat[co, t*C + ci] = w_hwio[dh, dw, ci, co]
    w1m = jnp.transpose(params["w1"], (3, 0, 1, 2)).reshape(Co, 9 * C)
    w2m = jnp.transpose(params["w2"], (3, 0, 1, 2)).reshape(Co, 9 * Co)

    # Per-tap validity masks emulating zero padding=1 on the flattened plane.
    q = jnp.arange(HW, dtype=jnp.int32)
    row, col = q // W, q % W
    masks = []
    for t in range(9):
        dh, dw = t // 3, t % 3
        r, c = row + dh - 1, col + dw - 1
        masks.append(((r >= 0) & (r < H) & (c >= 0) & (c < W))
                     .astype(jnp.float32))
    masks = jnp.stack(masks, axis=0)                           # (9, HW)

    kernel = functools.partial(basic_block_kernel, H=H, W=W)
    out = pl.pallas_call(
        kernel,
        out_shape=jax.ShapeDtypeStruct((N, Co, HW), jnp.float32),
        grid_spec=pltpu.PrefetchScalarGridSpec(
            num_scalar_prefetch=0,
            grid=(N,),
            in_specs=[
                pl.BlockSpec((1, C, HW), lambda n: (n, 0, 0)),
                pl.BlockSpec((Co, 9 * C), lambda n: (0, 0)),
                pl.BlockSpec((Co, 1), lambda n: (0, 0)),
                pl.BlockSpec((Co, 1), lambda n: (0, 0)),
                pl.BlockSpec((Co, 9 * Co), lambda n: (0, 0)),
                pl.BlockSpec((Co, 1), lambda n: (0, 0)),
                pl.BlockSpec((Co, 1), lambda n: (0, 0)),
                pl.BlockSpec((9, HW), lambda n: (0, 0)),
            ],
            out_specs=pl.BlockSpec((1, Co, HW), lambda n: (n, 0, 0)),
            scratch_shapes=[pltpu.VMEM((9 * C, HW), jnp.float32)],
        ),
        compiler_params=pltpu.CompilerParams(
            dimension_semantics=("parallel",)),   # >=2 units for v7x's 2 TCs
    )(x, w1m, s1.reshape(Co, 1), t1.reshape(Co, 1),
      w2m, s2.reshape(Co, 1), t2.reshape(Co, 1), masks)

    return out.reshape(N, Co, H, W)               # back to NCHW (pure reshape)


def ref_forward(x_nchw, p):
    """Pure-JAX reference (NCHW, same math as the PyTorch module, eval-mode BN)."""
    def conv3x3(x, w, b):
        y = lax.conv_general_dilated(
            x, w, window_strides=(1, 1), padding=((1, 1), (1, 1)),
            dimension_numbers=("NCHW", "HWIO", "NCHW"))
        return y + b[None, :, None, None]

    def bn(x, gamma, beta, mean, var):
        return ((x - mean[None, :, None, None])
                / jnp.sqrt(var[None, :, None, None] + EPS)
                * gamma[None, :, None, None] + beta[None, :, None, None])

    def lrelu(x):
        return jnp.where(x >= 0, x, LEAK * x)

    out = conv3x3(x_nchw, p["w1"], p["b1"])
    out = lrelu(bn(out, p["gamma1"], p["beta1"], p["mean1"], p["var1"]))
    out = conv3x3(out, p["w2"], p["b2"])
    out = bn(out, p["gamma2"], p["beta2"], p["mean2"], p["var2"])
    out = out + x_nchw
    return lrelu(out)


def make_params(key, cin, cout):
    ks = jax.random.split(key, 12)
    p = {
        "w1": 0.2 * jax.random.normal(ks[0], (3, 3, cin, cout), jnp.float32),
        "b1": 0.1 * jax.random.normal(ks[1], (cout,), jnp.float32),
        "gamma1": 1.0 + 0.1 * jax.random.normal(ks[2], (cout,), jnp.float32),
        "beta1": 0.1 * jax.random.normal(ks[3], (cout,), jnp.float32),
        "mean1": 0.1 * jax.random.normal(ks[4], (cout,), jnp.float32),
        "var1": 0.5 + jnp.abs(jax.random.normal(ks[5], (cout,), jnp.float32)),
        "w2": 0.2 * jax.random.normal(ks[6], (3, 3, cout, cout), jnp.float32),
        "b2": 0.1 * jax.random.normal(ks[7], (cout,), jnp.float32),
        "gamma2": 1.0 + 0.1 * jax.random.normal(ks[8], (cout,), jnp.float32),
        "beta2": 0.1 * jax.random.normal(ks[9], (cout,), jnp.float32),
        "mean2": 0.1 * jax.random.normal(ks[10], (cout,), jnp.float32),
        "var2": 0.5 + jnp.abs(jax.random.normal(ks[11], (cout,), jnp.float32)),
    }
    return p


if __name__ == "__main__":
    key = jax.random.PRNGKey(0)
    kx, kp = jax.random.split(key)

    N, C, H, W = 2, 4, 16, 16                      # input_dim = output_dim = 4
    x = jax.random.normal(kx, (N, C, H, W), jnp.float32)
    params = make_params(kp, C, C)

    out = basic_block_forward(x, params)
    out = jax.block_until_ready(out)

    ref = ref_forward(x, params)
    assert out.shape == ref.shape == (N, C, H, W)
    assert jnp.allclose(out, ref, rtol=1e-4, atol=1e-4), (
        float(jnp.max(jnp.abs(out - ref))))

    print("KERNEL_OK")
</pallas_src>

<mosaic_0001>
module attributes {stable_mosaic.version = 11 : i64} {
  func.func @basic_block_kernel(%arg0: i32, %arg1: memref<1x4x256xf32, #tpu.memory_space<vmem>>, %arg2: memref<4x36xf32, #tpu.memory_space<vmem>>, %arg3: memref<4x1xf32, #tpu.memory_space<vmem>>, %arg4: memref<4x1xf32, #tpu.memory_space<vmem>>, %arg5: memref<4x36xf32, #tpu.memory_space<vmem>>, %arg6: memref<4x1xf32, #tpu.memory_space<vmem>>, %arg7: memref<4x1xf32, #tpu.memory_space<vmem>>, %arg8: memref<9x256xf32, #tpu.memory_space<vmem>>, %arg9: memref<1x4x256xf32, #tpu.memory_space<vmem>>, %arg10: memref<36x256xf32, #tpu.memory_space<vmem>>) attributes {dimension_semantics = [#tpu.dimension_semantics<parallel>], iteration_bounds = array<i64: 2>, scalar_prefetch = 0 : i64, scratch_operands = 1 : i64, tpu.core_type = #tpu.core_type<tc>, window_params = [{transform_indices = @transform_0, window_bounds = array<i64: 1, 4, 256>}, {pipeline_mode = #tpu.pipeline_mode<synchronous>, transform_indices = @transform_1, window_bounds = array<i64: 4, 36>}, {pipeline_mode = #tpu.pipeline_mode<synchronous>, transform_indices = @transform_2, window_bounds = array<i64: 4, 1>}, {pipeline_mode = #tpu.pipeline_mode<synchronous>, transform_indices = @transform_3, window_bounds = array<i64: 4, 1>}, {pipeline_mode = #tpu.pipeline_mode<synchronous>, transform_indices = @transform_4, window_bounds = array<i64: 4, 36>}, {pipeline_mode = #tpu.pipeline_mode<synchronous>, transform_indices = @transform_5, window_bounds = array<i64: 4, 1>}, {pipeline_mode = #tpu.pipeline_mode<synchronous>, transform_indices = @transform_6, window_bounds = array<i64: 4, 1>}, {pipeline_mode = #tpu.pipeline_mode<synchronous>, transform_indices = @transform_7, window_bounds = array<i64: 9, 256>}, {transform_indices = @transform_8, window_bounds = array<i64: 1, 4, 256>}]} {
    %c0 = arith.constant 0 : index
    %c0_0 = arith.constant 0 : index
    %c0_1 = arith.constant 0 : index
    %0 = vector.load %arg1[%c0, %c0_0, %c0_1] : memref<1x4x256xf32, #tpu.memory_space<vmem>>, vector<1x4x256xf32>
    %1 = vector.shape_cast %0 : vector<1x4x256xf32> to vector<4x256xf32>
    %2 = vector.extract_strided_slice %1 {offsets = [0, 239], sizes = [4, 17], strides = [1, 1]} : vector<4x256xf32> to vector<4x17xf32>
    %3 = vector.extract_strided_slice %1 {offsets = [0, 0], sizes = [4, 239], strides = [1, 1]} : vector<4x256xf32> to vector<4x239xf32>
    %4 = tpu.concatenate %2, %3 in 1 : vector<4x17xf32>, vector<4x239xf32> -> vector<4x256xf32>
    %c0_2 = arith.constant 0 : index
    %c0_3 = arith.constant 0 : index
    %5 = vector.load %arg8[%c0_2, %c0_3] : memref<9x256xf32, #tpu.memory_space<vmem>>, vector<1x256xf32>
    %6 = vector.broadcast %5 : vector<1x256xf32> to vector<4x256xf32>
    %7 = arith.mulf %4, %6 : vector<4x256xf32>
    %c0_4 = arith.constant 0 : index
    %c0_5 = arith.constant 0 : index
    %8 = vector.load %arg10[%c0_4, %c0_5] : memref<36x256xf32, #tpu.memory_space<vmem>>, vector<4x256xf32>
    tpu.vector_store %arg10[%c0_4, %c0_5], %7 {strides = array<i32>} : memref<36x256xf32, #tpu.memory_space<vmem>>, vector<4x256xf32>,
    %9 = vector.extract_strided_slice %1 {offsets = [0, 240], sizes = [4, 16], strides = [1, 1]} : vector<4x256xf32> to vector<4x16xf32>
    %10 = vector.extract_strided_slice %1 {offsets = [0, 0], sizes = [4, 240], strides = [1, 1]} : vector<4x256xf32> to vector<4x240xf32>
    %11 = tpu.concatenate %9, %10 in 1 : vector<4x16xf32>, vector<4x240xf32> -> vector<4x256xf32>
    %c1 = arith.constant 1 : index
    %c0_6 = arith.constant 0 : index
    %12 = vector.load %arg8[%c1, %c0_6] : memref<9x256xf32, #tpu.memory_space<vmem>>, vector<1x256xf32>
    %13 = vector.broadcast %12 : vector<1x256xf32> to vector<4x256xf32>
    %14 = arith.mulf %11, %13 : vector<4x256xf32>
    %c4 = arith.constant 4 : index
    %c0_7 = arith.constant 0 : index
    %15 = vector.load %arg10[%c4, %c0_7] : memref<36x256xf32, #tpu.memory_space<vmem>>, vector<4x256xf32>
    tpu.vector_store %arg10[%c4, %c0_7], %14 {strides = array<i32>} : memref<36x256xf32, #tpu.memory_space<vmem>>, vector<4x256xf32>,
    %16 = vector.extract_strided_slice %1 {offsets = [0, 241], sizes = [4, 15], strides = [1, 1]} : vector<4x256xf32> to vector<4x15xf32>
    %17 = vector.extract_strided_slice %1 {offsets = [0, 0], sizes = [4, 241], strides = [1, 1]} : vector<4x256xf32> to vector<4x241xf32>
    %18 = tpu.concatenate %16, %17 in 1 : vector<4x15xf32>, vector<4x241xf32> -> vector<4x256xf32>
    %c2 = arith.constant 2 : index
    %c0_8 = arith.constant 0 : index
    %19 = vector.load %arg8[%c2, %c0_8] : memref<9x256xf32, #tpu.memory_space<vmem>>, vector<1x256xf32>
    %20 = vector.broadcast %19 : vector<1x256xf32> to vector<4x256xf32>
    %21 = arith.mulf %18, %20 : vector<4x256xf32>
    %c8 = arith.constant 8 : index
    %c0_9 = arith.constant 0 : index
    %22 = vector.load %arg10[%c8, %c0_9] : memref<36x256xf32, #tpu.memory_space<vmem>>, vector<4x256xf32>
    tpu.vector_store %arg10[%c8, %c0_9], %21 {strides = array<i32>} : memref<36x256xf32, #tpu.memory_space<vmem>>, vector<4x256xf32>,
    %23 = vector.extract_strided_slice %1 {offsets = [0, 255], sizes = [4, 1], strides = [1, 1]} : vector<4x256xf32> to vector<4x1xf32>
    %24 = vector.extract_strided_slice %1 {offsets = [0, 0], sizes = [4, 255], strides = [1, 1]} : vector<4x256xf32> to vector<4x255xf32>
    %25 = tpu.concatenate %23, %24 in 1 : vector<4x1xf32>, vector<4x255xf32> -> vector<4x256xf32>
    %c3 = arith.constant 3 : index
    %c0_10 = arith.constant 0 : index
    %26 = vector.load %arg8[%c3, %c0_10] : memref<9x256xf32, #tpu.memory_space<vmem>>, vector<1x256xf32>
    %27 = vector.broadcast %26 : vector<1x256xf32> to vector<4x256xf32>
    %28 = arith.mulf %25, %27 : vector<4x256xf32>
    %c12 = arith.constant 12 : index
    %c0_11 = arith.constant 0 : index
    %29 = vector.load %arg10[%c12, %c0_11] : memref<36x256xf32, #tpu.memory_space<vmem>>, vector<4x256xf32>
    tpu.vector_store %arg10[%c12, %c0_11], %28 {strides = array<i32>} : memref<36x256xf32, #tpu.memory_space<vmem>>, vector<4x256xf32>,
    %c4_12 = arith.constant 4 : index
    %c0_13 = arith.constant 0 : index
    %30 = vector.load %arg8[%c4_12, %c0_13] : memref<9x256xf32, #tpu.memory_space<vmem>>, vector<1x256xf32>
    %31 = vector.broadcast %30 : vector<1x256xf32> to vector<4x256xf32>
    %32 = arith.mulf %1, %31 : vector<4x256xf32>
    %c16 = arith.constant 16 : index
    %c0_14 = arith.constant 0 : index
    %33 = vector.load %arg10[%c16, %c0_14] : memref<36x256xf32, #tpu.memory_space<vmem>>, vector<4x256xf32>
    tpu.vector_store %arg10[%c16, %c0_14], %32 {strides = array<i32>} : memref<36x256xf32, #tpu.memory_space<vmem>>, vector<4x256xf32>,
    %34 = vector.extract_strided_slice %1 {offsets = [0, 1], sizes = [4, 255], strides = [1, 1]} : vector<4x256xf32> to vector<4x255xf32>
    %35 = vector.extract_strided_slice %1 {offsets = [0, 0], sizes = [4, 1], strides = [1, 1]} : vector<4x256xf32> to vector<4x1xf32>
    %36 = tpu.concatenate %34, %35 in 1 : vector<4x255xf32>, vector<4x1xf32> -> vector<4x256xf32>
    %c5 = arith.constant 5 : index
    %c0_15 = arith.constant 0 : index
    %37 = vector.load %arg8[%c5, %c0_15] : memref<9x256xf32, #tpu.memory_space<vmem>>, vector<1x256xf32>
    %38 = vector.broadcast %37 : vector<1x256xf32> to vector<4x256xf32>
    %39 = arith.mulf %36, %38 : vector<4x256xf32>
    %c20 = arith.constant 20 : index
    %c0_16 = arith.constant 0 : index
    %40 = vector.load %arg10[%c20, %c0_16] : memref<36x256xf32, #tpu.memory_space<vmem>>, vector<4x256xf32>
    tpu.vector_store %arg10[%c20, %c0_16], %39 {strides = array<i32>} : memref<36x256xf32, #tpu.memory_space<vmem>>, vector<4x256xf32>,
    %41 = vector.extract_strided_slice %1 {offsets = [0, 15], sizes = [4, 241], strides = [1, 1]} : vector<4x256xf32> to vector<4x241xf32>
    %42 = vector.extract_strided_slice %1 {offsets = [0, 0], sizes = [4, 15], strides = [1, 1]} : vector<4x256xf32> to vector<4x15xf32>
    %43 = tpu.concatenate %41, %42 in 1 : vector<4x241xf32>, vector<4x15xf32> -> vector<4x256xf32>
    %c6 = arith.constant 6 : index
    %c0_17 = arith.constant 0 : index
    %44 = vector.load %arg8[%c6, %c0_17] : memref<9x256xf32, #tpu.memory_space<vmem>>, vector<1x256xf32>
    %45 = vector.broadcast %44 : vector<1x256xf32> to vector<4x256xf32>
    %46 = arith.mulf %43, %45 : vector<4x256xf32>
    %c24 = arith.constant 24 : index
    %c0_18 = arith.constant 0 : index
    %47 = vector.load %arg10[%c24, %c0_18] : memref<36x256xf32, #tpu.memory_space<vmem>>, vector<4x256xf32>
    tpu.vector_store %arg10[%c24, %c0_18], %46 {strides = array<i32>} : memref<36x256xf32, #tpu.memory_space<vmem>>, vector<4x256xf32>,
    %48 = vector.extract_strided_slice %1 {offsets = [0, 16], sizes = [4, 240], strides = [1, 1]} : vector<4x256xf32> to vector<4x240xf32>
    %49 = vector.extract_strided_slice %1 {offsets = [0, 0], sizes = [4, 16], strides = [1, 1]} : vector<4x256xf32> to vector<4x16xf32>
    %50 = tpu.concatenate %48, %49 in 1 : vector<4x240xf32>, vector<4x16xf32> -> vector<4x256xf32>
    %c7 = arith.constant 7 : index
    %c0_19 = arith.constant 0 : index
    %51 = vector.load %arg8[%c7, %c0_19] : memref<9x256xf32, #tpu.memory_space<vmem>>, vector<1x256xf32>
    %52 = vector.broadcast %51 : vector<1x256xf32> to vector<4x256xf32>
    %53 = arith.mulf %50, %52 : vector<4x256xf32>
    %c28 = arith.constant 28 : index
    %c0_20 = arith.constant 0 : index
    %54 = vector.load %arg10[%c28, %c0_20] : memref<36x256xf32, #tpu.memory_space<vmem>>, vector<4x256xf32>
    tpu.vector_store %arg10[%c28, %c0_20], %53 {strides = array<i32>} : memref<36x256xf32, #tpu.memory_space<vmem>>, vector<4x256xf32>,
    %55 = vector.extract_strided_slice %1 {offsets = [0, 17], sizes = [4, 239], strides = [1, 1]} : vector<4x256xf32> to vector<4x239xf32>
    %56 = vector.extract_strided_slice %1 {offsets = [0, 0], sizes = [4, 17], strides = [1, 1]} : vector<4x256xf32> to vector<4x17xf32>
    %57 = tpu.concatenate %55, %56 in 1 : vector<4x239xf32>, vector<4x17xf32> -> vector<4x256xf32>
    %c8_21 = arith.constant 8 : index
    %c0_22 = arith.constant 0 : index
    %58 = vector.load %arg8[%c8_21, %c0_22] : memref<9x256xf32, #tpu.memory_space<vmem>>, vector<1x256xf32>
    %59 = vector.broadcast %58 : vector<1x256xf32> to vector<4x256xf32>
    %60 = arith.mulf %57, %59 : vector<4x256xf32>
    %c32 = arith.constant 32 : index
    %c0_23 = arith.constant 0 : index
    %61 = vector.load %arg10[%c32, %c0_23] : memref<36x256xf32, #tpu.memory_space<vmem>>, vector<4x256xf32>
    tpu.vector_store %arg10[%c32, %c0_23], %60 {strides = array<i32>} : memref<36x256xf32, #tpu.memory_space<vmem>>, vector<4x256xf32>,
    %c0_24 = arith.constant 0 : index
    %c0_25 = arith.constant 0 : index
    %62 = vector.load %arg2[%c0_24, %c0_25] : memref<4x36xf32, #tpu.memory_space<vmem>>, vector<4x36xf32>
    %c0_26 = arith.constant 0 : index
    %c0_27 = arith.constant 0 : index
    %63 = vector.load %arg10[%c0_26, %c0_27] : memref<36x256xf32, #tpu.memory_space<vmem>>, vector<36x256xf32>
    %cst = arith.constant dense<0.000000e+00> : vector<4x256xf32>
    %64 = tpu.matmul %62, %63, %cst {dimension_numbers = #tpu.dot_dimension_numbers<[1], [0], [0], [1], [0, 0, 1, 1], [], []>} : vector<4x36xf32>, vector<36x256xf32>, vector<4x256xf32> -> vector<4x256xf32>
    %c0_28 = arith.constant 0 : index
    %c0_29 = arith.constant 0 : index
    %65 = vector.load %arg3[%c0_28, %c0_29] : memref<4x1xf32, #tpu.memory_space<vmem>>, vector<4x1xf32>
    %66 = vector.broadcast %65 : vector<4x1xf32> to vector<4x256xf32>
    %67 = arith.mulf %64, %66 : vector<4x256xf32>
    %c0_30 = arith.constant 0 : index
    %c0_31 = arith.constant 0 : index
    %68 = vector.load %arg4[%c0_30, %c0_31] : memref<4x1xf32, #tpu.memory_space<vmem>>, vector<4x1xf32>
    %69 = vector.broadcast %68 : vector<4x1xf32> to vector<4x256xf32>
    %70 = arith.addf %67, %69 : vector<4x256xf32>
    %cst_32 = arith.constant 0.000000e+00 : f32
    %71 = vector.broadcast %cst_32 : f32 to vector<4x256xf32>
    %72 = arith.cmpf oge, %70, %71 : vector<4x256xf32>
    %cst_33 = arith.constant 5.000000e-02 : f32
    %73 = vector.broadcast %cst_33 : f32 to vector<4x256xf32>
    %74 = arith.mulf %73, %70 : vector<4x256xf32>
    %75 = arith.select %72, %70, %74 : vector<4x256xi1>, vector<4x256xf32>
    %76 = vector.extract_strided_slice %75 {offsets = [0, 239], sizes = [4, 17], strides = [1, 1]} : vector<4x256xf32> to vector<4x17xf32>
    %77 = vector.extract_strided_slice %75 {offsets = [0, 0], sizes = [4, 239], strides = [1, 1]} : vector<4x256xf32> to vector<4x239xf32>
    %78 = tpu.concatenate %76, %77 in 1 : vector<4x17xf32>, vector<4x239xf32> -> vector<4x256xf32>
    %c0_34 = arith.constant 0 : index
    %c0_35 = arith.constant 0 : index
    %79 = vector.load %arg8[%c0_34, %c0_35] : memref<9x256xf32, #tpu.memory_space<vmem>>, vector<1x256xf32>
    %80 = vector.broadcast %79 : vector<1x256xf32> to vector<4x256xf32>
    %81 = arith.mulf %78, %80 : vector<4x256xf32>
    %c0_36 = arith.constant 0 : index
    %c0_37 = arith.constant 0 : index
    %82 = vector.load %arg10[%c0_36, %c0_37] : memref<36x256xf32, #tpu.memory_space<vmem>>, vector<4x256xf32>
    tpu.vector_store %arg10[%c0_36, %c0_37], %81 {strides = array<i32>} : memref<36x256xf32, #tpu.memory_space<vmem>>, vector<4x256xf32>,
    %83 = vector.extract_strided_slice %75 {offsets = [0, 240], sizes = [4, 16], strides = [1, 1]} : vector<4x256xf32> to vector<4x16xf32>
    %84 = vector.extract_strided_slice %75 {offsets = [0, 0], sizes = [4, 240], strides = [1, 1]} : vector<4x256xf32> to vector<4x240xf32>
    %85 = tpu.concatenate %83, %84 in 1 : vector<4x16xf32>, vector<4x240xf32> -> vector<4x256xf32>
    %c1_38 = arith.constant 1 : index
    %c0_39 = arith.constant 0 : index
    %86 = vector.load %arg8[%c1_38, %c0_39] : memref<9x256xf32, #tpu.memory_space<vmem>>, vector<1x256xf32>
    %87 = vector.broadcast %86 : vector<1x256xf32> to vector<4x256xf32>
    %88 = arith.mulf %85, %87 : vector<4x256xf32>
    %c4_40 = arith.constant 4 : index
    %c0_41 = arith.constant 0 : index
    %89 = vector.load %arg10[%c4_40, %c0_41] : memref<36x256xf32, #tpu.memory_space<vmem>>, vector<4x256xf32>
    tpu.vector_store %arg10[%c4_40, %c0_41], %88 {strides = array<i32>} : memref<36x256xf32, #tpu.memory_space<vmem>>, vector<4x256xf32>,
    %90 = vector.extract_strided_slice %75 {offsets = [0, 241], sizes = [4, 15], strides = [1, 1]} : vector<4x256xf32> to vector<4x15xf32>
    %91 = vector.extract_strided_slice %75 {offsets = [0, 0], sizes = [4, 241], strides = [1, 1]} : vector<4x256xf32> to vector<4x241xf32>
    %92 = tpu.concatenate %90, %91 in 1 : vector<4x15xf32>, vector<4x241xf32> -> vector<4x256xf32>
    %c2_42 = arith.constant 2 : index
    %c0_43 = arith.constant 0 : index
    %93 = vector.load %arg8[%c2_42, %c0_43] : memref<9x256xf32, #tpu.memory_space<vmem>>, vector<1x256xf32>
    %94 = vector.broadcast %93 : vector<1x256xf32> to vector<4x256xf32>
    %95 = arith.mulf %92, %94 : vector<4x256xf32>
    %c8_44 = arith.constant 8 : index
    %c0_45 = arith.constant 0 : index
    %96 = vector.load %arg10[%c8_44, %c0_45] : memref<36x256xf32, #tpu.memory_space<vmem>>, vector<4x256xf32>
    tpu.vector_store %arg10[%c8_44, %c0_45], %95 {strides = array<i32>} : memref<36x256xf32, #tpu.memory_space<vmem>>, vector<4x256xf32>,
    %97 = vector.extract_strided_slice %75 {offsets = [0, 255], sizes = [4, 1], strides = [1, 1]} : vector<4x256xf32> to vector<4x1xf32>
    %98 = vector.extract_strided_slice %75 {offsets = [0, 0], sizes = [4, 255], strides = [1, 1]} : vector<4x256xf32> to vector<4x255xf32>
    %99 = tpu.concatenate %97, %98 in 1 : vector<4x1xf32>, vector<4x255xf32> -> vector<4x256xf32>
    %c3_46 = arith.constant 3 : index
    %c0_47 = arith.constant 0 : index
    %100 = vector.load %arg8[%c3_46, %c0_47] : memref<9x256xf32, #tpu.memory_space<vmem>>, vector<1x256xf32>
    %101 = vector.broadcast %100 : vector<1x256xf32> to vector<4x256xf32>
    %102 = arith.mulf %99, %101 : vector<4x256xf32>
    %c12_48 = arith.constant 12 : index
    %c0_49 = arith.constant 0 : index
    %103 = vector.load %arg10[%c12_48, %c0_49] : memref<36x256xf32, #tpu.memory_space<vmem>>, vector<4x256xf32>
    tpu.vector_store %arg10[%c12_48, %c0_49], %102 {strides = array<i32>} : memref<36x256xf32, #tpu.memory_space<vmem>>, vector<4x256xf32>,
    %c4_50 = arith.constant 4 : index
    %c0_51 = arith.constant 0 : index
    %104 = vector.load %arg8[%c4_50, %c0_51] : memref<9x256xf32, #tpu.memory_space<vmem>>, vector<1x256xf32>
    %105 = vector.broadcast %104 : vector<1x256xf32> to vector<4x256xf32>
    %106 = arith.mulf %75, %105 : vector<4x256xf32>
    %c16_52 = arith.constant 16 : index
    %c0_53 = arith.constant 0 : index
    %107 = vector.load %arg10[%c16_52, %c0_53] : memref<36x256xf32, #tpu.memory_space<vmem>>, vector<4x256xf32>
    tpu.vector_store %arg10[%c16_52, %c0_53], %106 {strides = array<i32>} : memref<36x256xf32, #tpu.memory_space<vmem>>, vector<4x256xf32>,
    %108 = vector.extract_strided_slice %75 {offsets = [0, 1], sizes = [4, 255], strides = [1, 1]} : vector<4x256xf32> to vector<4x255xf32>
    %109 = vector.extract_strided_slice %75 {offsets = [0, 0], sizes = [4, 1], strides = [1, 1]} : vector<4x256xf32> to vector<4x1xf32>
    %110 = tpu.concatenate %108, %109 in 1 : vector<4x255xf32>, vector<4x1xf32> -> vector<4x256xf32>
    %c5_54 = arith.constant 5 : index
    %c0_55 = arith.constant 0 : index
    %111 = vector.load %arg8[%c5_54, %c0_55] : memref<9x256xf32, #tpu.memory_space<vmem>>, vector<1x256xf32>
    %112 = vector.broadcast %111 : vector<1x256xf32> to vector<4x256xf32>
    %113 = arith.mulf %110, %112 : vector<4x256xf32>
    %c20_56 = arith.constant 20 : index
    %c0_57 = arith.constant 0 : index
    %114 = vector.load %arg10[%c20_56, %c0_57] : memref<36x256xf32, #tpu.memory_space<vmem>>, vector<4x256xf32>
    tpu.vector_store %arg10[%c20_56, %c0_57], %113 {strides = array<i32>} : memref<36x256xf32, #tpu.memory_space<vmem>>, vector<4x256xf32>,
    %115 = vector.extract_strided_slice %75 {offsets = [0, 15], sizes = [4, 241], strides = [1, 1]} : vector<4x256xf32> to vector<4x241xf32>
    %116 = vector.extract_strided_slice %75 {offsets = [0, 0], sizes = [4, 15], strides = [1, 1]} : vector<4x256xf32> to vector<4x15xf32>
    %117 = tpu.concatenate %115, %116 in 1 : vector<4x241xf32>, vector<4x15xf32> -> vector<4x256xf32>
    %c6_58 = arith.constant 6 : index
    %c0_59 = arith.constant 0 : index
    %118 = vector.load %arg8[%c6_58, %c0_59] : memref<9x256xf32, #tpu.memory_space<vmem>>, vector<1x256xf32>
    %119 = vector.broadcast %118 : vector<1x256xf32> to vector<4x256xf32>
    %120 = arith.mulf %117, %119 : vector<4x256xf32>
    %c24_60 = arith.constant 24 : index
    %c0_61 = arith.constant 0 : index
    %121 = vector.load %arg10[%c24_60, %c0_61] : memref<36x256xf32, #tpu.memory_space<vmem>>, vector<4x256xf32>
    tpu.vector_store %arg10[%c24_60, %c0_61], %120 {strides = array<i32>} : memref<36x256xf32, #tpu.memory_space<vmem>>, vector<4x256xf32>,
    %122 = vector.extract_strided_slice %75 {offsets = [0, 16], sizes = [4, 240], strides = [1, 1]} : vector<4x256xf32> to vector<4x240xf32>
    %123 = vector.extract_strided_slice %75 {offsets = [0, 0], sizes = [4, 16], strides = [1, 1]} : vector<4x256xf32> to vector<4x16xf32>
    %124 = tpu.concatenate %122, %123 in 1 : vector<4x240xf32>, vector<4x16xf32> -> vector<4x256xf32>
    %c7_62 = arith.constant 7 : index
    %c0_63 = arith.constant 0 : index
    %125 = vector.load %arg8[%c7_62, %c0_63] : memref<9x256xf32, #tpu.memory_space<vmem>>, vector<1x256xf32>
    %126 = vector.broadcast %125 : vector<1x256xf32> to vector<4x256xf32>
    %127 = arith.mulf %124, %126 : vector<4x256xf32>
    %c28_64 = arith.constant 28 : index
    %c0_65 = arith.constant 0 : index
    %128 = vector.load %arg10[%c28_64, %c0_65] : memref<36x256xf32, #tpu.memory_space<vmem>>, vector<4x256xf32>
    tpu.vector_store %arg10[%c28_64, %c0_65], %127 {strides = array<i32>} : memref<36x256xf32, #tpu.memory_space<vmem>>, vector<4x256xf32>,
    %129 = vector.extract_strided_slice %75 {offsets = [0, 17], sizes = [4, 239], strides = [1, 1]} : vector<4x256xf32> to vector<4x239xf32>
    %130 = vector.extract_strided_slice %75 {offsets = [0, 0], sizes = [4, 17], strides = [1, 1]} : vector<4x256xf32> to vector<4x17xf32>
    %131 = tpu.concatenate %129, %130 in 1 : vector<4x239xf32>, vector<4x17xf32> -> vector<4x256xf32>
    %c8_66 = arith.constant 8 : index
    %c0_67 = arith.constant 0 : index
    %132 = vector.load %arg8[%c8_66, %c0_67] : memref<9x256xf32, #tpu.memory_space<vmem>>, vector<1x256xf32>
    %133 = vector.broadcast %132 : vector<1x256xf32> to vector<4x256xf32>
    %134 = arith.mulf %131, %133 : vector<4x256xf32>
    %c32_68 = arith.constant 32 : index
    %c0_69 = arith.constant 0 : index
    %135 = vector.load %arg10[%c32_68, %c0_69] : memref<36x256xf32, #tpu.memory_space<vmem>>, vector<4x256xf32>
    tpu.vector_store %arg10[%c32_68, %c0_69], %134 {strides = array<i32>} : memref<36x256xf32, #tpu.memory_space<vmem>>, vector<4x256xf32>,
    %c0_70 = arith.constant 0 : index
    %c0_71 = arith.constant 0 : index
    %136 = vector.load %arg5[%c0_70, %c0_71] : memref<4x36xf32, #tpu.memory_space<vmem>>, vector<4x36xf32>
    %c0_72 = arith.constant 0 : index
    %c0_73 = arith.constant 0 : index
    %137 = vector.load %arg10[%c0_72, %c0_73] : memref<36x256xf32, #tpu.memory_space<vmem>>, vector<36x256xf32>
    %cst_74 = arith.constant dense<0.000000e+00> : vector<4x256xf32>
    %138 = tpu.matmul %136, %137, %cst_74 {dimension_numbers = #tpu.dot_dimension_numbers<[1], [0], [0], [1], [0, 0, 1, 1], [], []>} : vector<4x36xf32>, vector<36x256xf32>, vector<4x256xf32> -> vector<4x256xf32>
    %c0_75 = arith.constant 0 : index
    %c0_76 = arith.constant 0 : index
    %139 = vector.load %arg6[%c0_75, %c0_76] : memref<4x1xf32, #tpu.memory_space<vmem>>, vector<4x1xf32>
    %140 = vector.broadcast %139 : vector<4x1xf32> to vector<4x256xf32>
    %141 = arith.mulf %138, %140 : vector<4x256xf32>
    %c0_77 = arith.constant 0 : index
    %c0_78 = arith.constant 0 : index
    %142 = vector.load %arg7[%c0_77, %c0_78] : memref<4x1xf32, #tpu.memory_space<vmem>>, vector<4x1xf32>
    %143 = vector.broadcast %142 : vector<4x1xf32> to vector<4x256xf32>
    %144 = arith.addf %141, %143 : vector<4x256xf32>
    %145 = arith.addf %144, %1 : vector<4x256xf32>
    %cst_79 = arith.constant 0.000000e+00 : f32
    %146 = vector.broadcast %cst_79 : f32 to vector<4x256xf32>
    %147 = arith.cmpf oge, %145, %146 : vector<4x256xf32>
    %cst_80 = arith.constant 5.000000e-02 : f32
    %148 = vector.broadcast %cst_80 : f32 to vector<4x256xf32>
    %149 = arith.mulf %148, %145 : vector<4x256xf32>
    %150 = arith.select %147, %145, %149 : vector<4x256xi1>, vector<4x256xf32>
    %c0_81 = arith.constant 0 : index
    %c0_82 = arith.constant 0 : index
    %c0_83 = arith.constant 0 : index
    %151 = vector.load %arg9[%c0_81, %c0_82, %c0_83] : memref<1x4x256xf32, #tpu.memory_space<vmem>>, vector<1x4x256xf32>
    %152 = vector.shape_cast %151 : vector<1x4x256xf32> to vector<4x256xf32>
    %153 = vector.shape_cast %150 : vector<4x256xf32> to vector<1x4x256xf32>
    tpu.vector_store %arg9[%c0_81, %c0_82, %c0_83], %153 {strides = array<i32>} : memref<1x4x256xf32, #tpu.memory_space<vmem>>, vector<1x4x256xf32>,
    return
  }
  func.func @transform_0(%arg0: i32) -> (i32, i32, i32) {
    %c0_i32 = arith.constant 0 : i32
    %c0_i32_0 = arith.constant 0 : i32
    %c0_i32_1 = arith.constant 0 : i32
    return %arg0, %c0_i32, %c0_i32_0 : i32, i32, i32
  }
  func.func @transform_1(%arg0: i32) -> (i32, i32) {
    %c0_i32 = arith.constant 0 : i32
    %c0_i32_0 = arith.constant 0 : i32
    %c0_i32_1 = arith.constant 0 : i32
    return %c0_i32, %c0_i32_0 : i32, i32
  }
  func.func @transform_2(%arg0: i32) -> (i32, i32) {
    %c0_i32 = arith.constant 0 : i32
    %c0_i32_0 = arith.constant 0 : i32
    %c0_i32_1 = arith.constant 0 : i32
    return %c0_i32, %c0_i32_0 : i32, i32
  }
  func.func @transform_3(%arg0: i32) -> (i32, i32) {
    %c0_i32 = arith.constant 0 : i32
    %c0_i32_0 = arith.constant 0 : i32
    %c0_i32_1 = arith.constant 0 : i32
    return %c0_i32, %c0_i32_0 : i32, i32
  }
  func.func @transform_4(%arg0: i32) -> (i32, i32) {
    %c0_i32 = arith.constant 0 : i32
    %c0_i32_0 = arith.constant 0 : i32
    %c0_i32_1 = arith.constant 0 : i32
    return %c0_i32, %c0_i32_0 : i32, i32
  }
  func.func @transform_5(%arg0: i32) -> (i32, i32) {
    %c0_i32 = arith.constant 0 : i32
    %c0_i32_0 = arith.constant 0 : i32
    %c0_i32_1 = arith.constant 0 : i32
    return %c0_i32, %c0_i32_0 : i32, i32
  }
  func.func @transform_6(%arg0: i32) -> (i32, i32) {
    %c0_i32 = arith.constant 0 : i32
    %c0_i32_0 = arith.constant 0 : i32
    %c0_i32_1 = arith.constant 0 : i32
    return %c0_i32, %c0_i32_0 : i32, i32
  }
  func.func @transform_7(%arg0: i32) -> (i32, i32) {
    %c0_i32 = arith.constant 0 : i32
    %c0_i32_0 = arith.constant 0 : i32
    %c0_i32_1 = arith.constant 0 : i32
    return %c0_i32, %c0_i32_0 : i32, i32
  }
  func.func @transform_8(%arg0: i32) -> (i32, i32, i32) {
    %c0_i32 = arith.constant 0 : i32
    %c0_i32_0 = arith.constant 0 : i32
    %c0_i32_1 = arith.constant 0 : i32
    return %arg0, %c0_i32, %c0_i32_0 : i32, i32, i32
  }
}

</mosaic_0001>

<llo_original>
// kernel: tpu_custom_call.1
$region0: #{tpu_custom_call.1}
  #allocation0 [shape = 'u32[]', space=smem, size = 0x4, offset = 0x4, fixed_abs, tag = 'smem constant byte address 0x4 - core index']
  #allocation1 [shape = 'u32[72,128]{1,0:T(1,128)}', space=vmem, size = 0x9000, scoped, tag = 'internal scratch']
  #allocation2 [shape = 'f32[36,256]{1,0:T(8,128)}', space=vmem, size = 0xa000, scoped, tag = 'scratch operand']
  %s0 = inlined_call_operand.hbm [shape: f32[2,4,256], index: 0, kind: input, shape index: {}]
  %s1 = inlined_call_operand.vmem [shape: f32[4,36], index: 1, kind: input, shape index: {}]
  %s2 = inlined_call_operand.vmem [shape: f32[4,1], index: 2, kind: input, shape index: {}]
  %s3 = inlined_call_operand.vmem [shape: f32[4,1], index: 3, kind: input, shape index: {}]
  %s4 = inlined_call_operand.vmem [shape: f32[4,36], index: 4, kind: input, shape index: {}]
  %s5 = inlined_call_operand.vmem [shape: f32[4,1], index: 5, kind: input, shape index: {}]
  %s6 = inlined_call_operand.vmem [shape: f32[4,1], index: 6, kind: input, shape index: {}]
  %s7 = inlined_call_operand.hbm [shape: f32[9,256], index: 7, kind: input, shape index: {}]
  %s8 = inlined_call_operand.hbm [shape: f32[2,4,256], index: 8, kind: output, shape index: {}]
  %s9 = sld [smem:[#allocation0]]
  $region73: #{tpu_custom_call.1} parent=0
    _
  %s11 = ssub.s32 1, %s9
  %s12 = scalar_select 0, %s11, %s9
  $region1: #{tpu_custom_call.1} parent=0
    #allocation3 [shape = 'u8[8192]{0}', space=vmem, size = 0x2000, scoped, tag = 'input window, operand 0']
    #allocation4 [shape = 's32[2]{0}', space=sflag, size = 0x8, scoped, tag = 'scoped memory for tpu_custom_call.1']
    #allocation5 [shape = 's32[2]{0}', space=sflag, size = 0x8, scoped, tag = 'scoped memory for tpu_custom_call.1']
    #allocation6 [shape = 'u8[16384]{0}', space=vmem, size = 0x4000, scoped, tag = 'input window, operand 7, single buffered']
    #allocation7 [shape = 's32[1]{0}', space=sflag, size = 0x4, scoped, tag = 'scoped memory for tpu_custom_call.1']
    #allocation8 [shape = 'u8[8192]{0}', space=vmem, size = 0x2000, scoped, tag = 'output window, operand 0']
    %13 = vsyncpa [#allocation4], 0
    %s14 = scalar_lea.sflag [#allocation4], 1
    %15 = vsyncpa %s14, 0
    %16 = vsyncpa [#allocation7], 0
    %17 = vsyncpa [#allocation5], 0
    %s18 = scalar_lea.sflag [#allocation5], 1
    %19 = vsyncpa %s18, 0
    loop: start=0, step=1, limit=4
    $region2: #{tpu_custom_call.1} parent=1 // loop_pre_header
      _
    $region3: #{tpu_custom_call.1} parent=1 // loop_header
      %s21 = sphi 0, %s25
      %p22 = scmp.ge.s32.totalorder %s21, 4
      %s31 = sphi 0, %s33
      %s34 = sphi 0, %s31
      %s35 = sphi 0, %s34
      %s51 = sphi 0, %s35
      %s55 = sphi 0, %s55
      %s57 = sphi 0, %s55
      %s58 = sphi 0, %s57
      %s72 = sphi 0, %s58
      %s76 = sphi 0, %s76
      %s78 = sphi 0, %s76
      %s79 = sphi 0, %s78
      %s93 = sphi 0, %s79
      %s97 = sphi 0, %s97
      %s99 = sphi 0, %s97
      %s100 = sphi 0, %s99
      %s114 = sphi 0, %s100
      %s118 = sphi 0, %s118
      %s120 = sphi 0, %s118
      %s121 = sphi 0, %s120
      %s135 = sphi 0, %s121
      %s139 = sphi 0, %s139
      %s141 = sphi 0, %s139
      %s142 = sphi 0, %s141
      %s156 = sphi 0, %s142
      %s160 = sphi 0, %s160
      %s162 = sphi 0, %s160
      %s163 = sphi 0, %s162
      %s177 = sphi 0, %s163
      %s181 = sphi 0, %s181
      %s183 = sphi 0, %s181
      %s184 = sphi 0, %s183
      %s198 = sphi 0, %s184
      %s204 = sphi 0, %s206
      %s207 = sphi 0, %s204
      %s208 = sphi 0, %s207
      %s224 = sphi 0, %s208
    $region4: #{tpu_custom_call.1} parent=1 // loop_header_branch
      %24 = sbr.rel (%p22) target = $region8
    $region5: #{tpu_custom_call.1} parent=1 // loop_body
      %s26 = ssub.s32 %s21, 1
      %s27 = ssub.s32 %s21, 2
      %s28 = sadd.s32 %s21, 1
      %s29 = ssub.s32 %s21, %s28
      %p30 = scmp.eq.s32.totalorder %s29, 0
      %s32 = sadd.s32 %s31, 1
      %s33 = scalar_select %p30, %s31, %s32
      %p36 = pneg %p30
      %p37 = scmp.eq.s32.totalorder %s21, 1
      %p38 = por %p36, %p37
      %p39 = scmp.ne.s32.totalorder %s31, %s34
      %p40 = scmp.eq.s32.totalorder %s21, 0
      %p41 = por %p39, %p40
      %p42 = scmp.ne.s32.totalorder %s31, %s34
      %p43 = scmp.eq.s32.totalorder %s26, 1
      %p44 = por %p42, %p43
      %p45 = scmp.ne.s32.totalorder %s34, %s35
      %p46 = scmp.eq.s32.totalorder %s26, 0
      %p47 = por %p45, %p46
      %p48 = scmp.ne.s32.totalorder %s34, %s35
      %p49 = scmp.eq.s32.totalorder %s27, 1
      %p50 = por %p48, %p49
      %p52 = scmp.ne.s32.totalorder %s35, %s51
      %p53 = scmp.eq.s32.totalorder %s27, 0
      %p54 = por %p52, %p53
      %s56 = sadd.s32 %s55, 1
      %p59 = scmp.eq.s32.totalorder %s21, 1
      %p60 = scmp.ne.s32.totalorder %s55, %s57
      %p61 = scmp.eq.s32.totalorder %s21, 0
      %p62 = por %p60, %p61
      %p63 = scmp.ne.s32.totalorder %s55, %s57
      %p64 = scmp.eq.s32.totalorder %s26, 1
      %p65 = por %p63, %p64
      %p66 = scmp.ne.s32.totalorder %s57, %s58
      %p67 = scmp.eq.s32.totalorder %s26, 0
      %p68 = por %p66, %p67
      %p69 = scmp.ne.s32.totalorder %s57, %s58
      %p70 = scmp.eq.s32.totalorder %s27, 1
      %p71 = por %p69, %p70
      %p73 = scmp.ne.s32.totalorder %s58, %s72
      %p74 = scmp.eq.s32.totalorder %s27, 0
      %p75 = por %p73, %p74
      %s77 = sadd.s32 %s76, 1
      %p80 = scmp.eq.s32.totalorder %s21, 1
      %p81 = scmp.ne.s32.totalorder %s76, %s78
      %p82 = scmp.eq.s32.totalorder %s21, 0
      %p83 = por %p81, %p82
      %p84 = scmp.ne.s32.totalorder %s76, %s78
      %p85 = scmp.eq.s32.totalorder %s26, 1
      %p86 = por %p84, %p85
      %p87 = scmp.ne.s32.totalorder %s78, %s79
      %p88 = scmp.eq.s32.totalorder %s26, 0
      %p89 = por %p87, %p88
      %p90 = scmp.ne.s32.totalorder %s78, %s79
      %p91 = scmp.eq.s32.totalorder %s27, 1
      %p92 = por %p90, %p91
      %p94 = scmp.ne.s32.totalorder %s79, %s93
      %p95 = scmp.eq.s32.totalorder %s27, 0
      %p96 = por %p94, %p95
      %s98 = sadd.s32 %s97, 1
      %p101 = scmp.eq.s32.totalorder %s21, 1
      %p102 = scmp.ne.s32.totalorder %s97, %s99
      %p103 = scmp.eq.s32.totalorder %s21, 0
      %p104 = por %p102, %p103
      %p105 = scmp.ne.s32.totalorder %s97, %s99
      %p106 = scmp.eq.s32.totalorder %s26, 1
      %p107 = por %p105, %p106
      %p108 = scmp.ne.s32.totalorder %s99, %s100
      %p109 = scmp.eq.s32.totalorder %s26, 0
      %p110 = por %p108, %p109
      %p111 = scmp.ne.s32.totalorder %s99, %s100
      %p112 = scmp.eq.s32.totalorder %s27, 1
      %p113 = por %p111, %p112
      %p115 = scmp.ne.s32.totalorder %s100, %s114
      %p116 = scmp.eq.s32.totalorder %s27, 0
      %p117 = por %p115, %p116
      %s119 = sadd.s32 %s118, 1
      %p122 = scmp.eq.s32.totalorder %s21, 1
      %p123 = scmp.ne.s32.totalorder %s118, %s120
      %p124 = scmp.eq.s32.totalorder %s21, 0
      %p125 = por %p123, %p124
      %p126 = scmp.ne.s32.totalorder %s118, %s120
      %p127 = scmp.eq.s32.totalorder %s26, 1
      %p128 = por %p126, %p127
      %p129 = scmp.ne.s32.totalorder %s120, %s121
      %p130 = scmp.eq.s32.totalorder %s26, 0
      %p131 = por %p129, %p130
      %p132 = scmp.ne.s32.totalorder %s120, %s121
      %p133 = scmp.eq.s32.totalorder %s27, 1
      %p134 = por %p132, %p133
      %p136 = scmp.ne.s32.totalorder %s121, %s135
      %p137 = scmp.eq.s32.totalorder %s27, 0
      %p138 = por %p136, %p137
      %s140 = sadd.s32 %s139, 1
      %p143 = scmp.eq.s32.totalorder %s21, 1
      %p144 = scmp.ne.s32.totalorder %s139, %s141
      %p145 = scmp.eq.s32.totalorder %s21, 0
      %p146 = por %p144, %p145
      %p147 = scmp.ne.s32.totalorder %s139, %s141
      %p148 = scmp.eq.s32.totalorder %s26, 1
      %p149 = por %p147, %p148
      %p150 = scmp.ne.s32.totalorder %s141, %s142
      %p151 = scmp.eq.s32.totalorder %s26, 0
      %p152 = por %p150, %p151
      %p153 = scmp.ne.s32.totalorder %s141, %s142
      %p154 = scmp.eq.s32.totalorder %s27, 1
      %p155 = por %p153, %p154
      %p157 = scmp.ne.s32.totalorder %s142, %s156
      %p158 = scmp.eq.s32.totalorder %s27, 0
      %p159 = por %p157, %p158
      %s161 = sadd.s32 %s160, 1
      %p164 = scmp.eq.s32.totalorder %s21, 1
      %p165 = scmp.ne.s32.totalorder %s160, %s162
      %p166 = scmp.eq.s32.totalorder %s21, 0
      %p167 = por %p165, %p166
      %p168 = scmp.ne.s32.totalorder %s160, %s162
      %p169 = scmp.eq.s32.totalorder %s26, 1
      %p170 = por %p168, %p169
      %p171 = scmp.ne.s32.totalorder %s162, %s163
      %p172 = scmp.eq.s32.totalorder %s26, 0
      %p173 = por %p171, %p172
      %p174 = scmp.ne.s32.totalorder %s162, %s163
      %p175 = scmp.eq.s32.totalorder %s27, 1
      %p176 = por %p174, %p175
      %p178 = scmp.ne.s32.totalorder %s163, %s177
      %p179 = scmp.eq.s32.totalorder %s27, 0
      %p180 = por %p178, %p179
      %s182 = sadd.s32 %s181, 1
      %p185 = scmp.eq.s32.totalorder %s21, 1
      %p186 = scmp.ne.s32.totalorder %s181, %s183
      %p187 = scmp.eq.s32.totalorder %s21, 0
      %p188 = por %p186, %p187
      %p189 = scmp.ne.s32.totalorder %s181, %s183
      %p190 = scmp.eq.s32.totalorder %s26, 1
      %p191 = por %p189, %p190
      %p192 = scmp.ne.s32.totalorder %s183, %s184
      %p193 = scmp.eq.s32.totalorder %s26, 0
      %p194 = por %p192, %p193
      %p195 = scmp.ne.s32.totalorder %s183, %s184
      %p196 = scmp.eq.s32.totalorder %s27, 1
      %p197 = por %p195, %p196
      %p199 = scmp.ne.s32.totalorder %s184, %s198
      %p200 = scmp.eq.s32.totalorder %s27, 0
      %p201 = por %p199, %p200
      %s202 = ssub.s32 %s21, %s28
      %p203 = scmp.eq.s32.totalorder %s202, 0
      %s205 = sadd.s32 %s204, 1
      %s206 = scalar_select %p203, %s204, %s205
      %p209 = pneg %p203
      %p210 = scmp.eq.s32.totalorder %s21, 1
      %p211 = por %p209, %p210
      %p212 = scmp.ne.s32.totalorder %s204, %s207
      %p213 = scmp.eq.s32.totalorder %s21, 0
      %p214 = por %p212, %p213
      %p215 = scmp.ne.s32.totalorder %s204, %s207
      %p216 = scmp.eq.s32.totalorder %s26, 1
      %p217 = por %p215, %p216
      %p218 = scmp.ne.s32.totalorder %s207, %s208
      %p219 = scmp.eq.s32.totalorder %s26, 0
      %p220 = por %p218, %p219
      %p221 = scmp.ne.s32.totalorder %s207, %s208
      %p222 = scmp.eq.s32.totalorder %s27, 1
      %p223 = por %p221, %p222
      %p225 = scmp.ne.s32.totalorder %s208, %s224
      %p226 = scmp.eq.s32.totalorder %s27, 0
      %p227 = por %p225, %p226
      %p228 = scmp.le.s32.totalorder 1, %s21
      %p229 = scmp.lt.s32.totalorder %s21, 3
      %p230 = pnand %p228, %p229
      %p231 = pneg %p230
      // Predicated region
      $region9: #{tpu_custom_call.1} parent=5 // pred_check
        _
      $region10: #{tpu_custom_call.1} parent=5 // pred_check_branch
        %233 = sbr.rel (%p230) target = $region12
      $region11: #{tpu_custom_call.1} parent=5 // pred_region
        %s234 = ssub.s32 %s21, 1
        // Predicated region
        $region13: #{tpu_custom_call.1} parent=11 // pred_check
          %p235 = pneg %p68
        $region14: #{tpu_custom_call.1} parent=11 // pred_check_branch
          %237 = sbr.rel (%p235) target = $region16
        $region15: #{tpu_custom_call.1} parent=11 // pred_region
          _
        $region16: #{tpu_custom_call.1} parent=11 // pred_fallthru
          _
        // Predicated region
        $region17: #{tpu_custom_call.1} parent=11 // pred_check
          %p238 = pneg %p89
        $region18: #{tpu_custom_call.1} parent=11 // pred_check_branch
          %240 = sbr.rel (%p238) target = $region20
        $region19: #{tpu_custom_call.1} parent=11 // pred_region
          _
        $region20: #{tpu_custom_call.1} parent=11 // pred_fallthru
          _
        // Predicated region
        $region21: #{tpu_custom_call.1} parent=11 // pred_check
          %p241 = pneg %p110
        $region22: #{tpu_custom_call.1} parent=11 // pred_check_branch
          %243 = sbr.rel (%p241) target = $region24
        $region23: #{tpu_custom_call.1} parent=11 // pred_region
          _
        $region24: #{tpu_custom_call.1} parent=11 // pred_fallthru
          _
        // Predicated region
        $region25: #{tpu_custom_call.1} parent=11 // pred_check
          %p244 = pneg %p131
        $region26: #{tpu_custom_call.1} parent=11 // pred_check_branch
          %246 = sbr.rel (%p244) target = $region28
        $region27: #{tpu_custom_call.1} parent=11 // pred_region
          _
        $region28: #{tpu_custom_call.1} parent=11 // pred_fallthru
          _
        // Predicated region
        $region29: #{tpu_custom_call.1} parent=11 // pred_check
          %p247 = pneg %p152
        $region30: #{tpu_custom_call.1} parent=11 // pred_check_branch
          %249 = sbr.rel (%p247) target = $region32
        $region31: #{tpu_custom_call.1} parent=11 // pred_region
          _
        $region32: #{tpu_custom_call.1} parent=11 // pred_fallthru
          _
        // Predicated region
        $region33: #{tpu_custom_call.1} parent=11 // pred_check
          %p250 = pneg %p173
        $region34: #{tpu_custom_call.1} parent=11 // pred_check_branch
          %252 = sbr.rel (%p250) target = $region36
        $region35: #{tpu_custom_call.1} parent=11 // pred_region
          _
        $region36: #{tpu_custom_call.1} parent=11 // pred_fallthru
          _
        // Predicated region
        $region37: #{tpu_custom_call.1} parent=11 // pred_check
          %p253 = pneg %p194
        $region38: #{tpu_custom_call.1} parent=11 // pred_check_branch
          %255 = sbr.rel (%p253) target = $region40
        $region39: #{tpu_custom_call.1} parent=11 // pred_region
          %257 = vsyncadd [#allocation7], 0
          %s258 = sshll.u32 %s7, 4
          %s259 = int_to_ptr.hbm [resolvable:$true] %s258
          %s260 = sshll.u32 [#allocation6], 4
          %s261 = int_to_ptr.vmem [resolvable:$true] %s260
          %266 = dma.hbm_to_vmem [thread:$0]  %s259, 512, %s261, [#allocation7], 256, 256, 16
        $region40: #{tpu_custom_call.1} parent=11 // pred_fallthru
          _
      $region12: #{tpu_custom_call.1} parent=5 // pred_fallthru
        _
      %p267 = scmp.lt.s32.totalorder %s21, 2
      // Predicated region
      $region41: #{tpu_custom_call.1} parent=5 // pred_check
        %p268 = pneg %p267
      $region42: #{tpu_custom_call.1} parent=5 // pred_check_branch
        %270 = sbr.rel (%p268) target = $region44
      $region43: #{tpu_custom_call.1} parent=5 // pred_region
        // Predicated region
        $region45: #{tpu_custom_call.1} parent=43 // pred_check
          %p271 = pneg %p41
        $region46: #{tpu_custom_call.1} parent=43 // pred_check_branch
          %273 = sbr.rel (%p271) target = $region48
        $region47: #{tpu_custom_call.1} parent=43 // pred_region
          %s274 = sand.u32 %s31, 1
          %s275 = scalar_lea.sflag [#allocation4], %s274
          %s276 = sand.u32 %s31, 1
          %s277 = smul.addr %s276, 8
          %s278 = scalar_lea.vmem [#allocation3], %s277
          %280 = vsyncadd %s275, 0
          %s281 = smul.addr %s21, 2
          %s282 = smul.addr %s281, 4
          %s283 = scalar_lea.hbm %s0, %s282
          %s285 = sshll.u32 %s283, 4
          %s286 = int_to_ptr.hbm [resolvable:$true] %s285
          %s287 = sshll.u32 %s278, 4
          %s288 = int_to_ptr.vmem [resolvable:$true] %s287
          %290 = dma.hbm_to_vmem [thread:$0]  %s286, 128, %s288, %s275
        $region48: #{tpu_custom_call.1} parent=43 // pred_fallthru
          _
      $region44: #{tpu_custom_call.1} parent=5 // pred_fallthru
        _
      %p291 = scmp.le.s32.totalorder 1, %s21
      %p292 = scmp.lt.s32.totalorder %s21, 3
      %p293 = pnand %p291, %p292
      %p294 = pneg %p293
      // Predicated region
      $region49: #{tpu_custom_call.1} parent=5 // pred_check
        _
      $region50: #{tpu_custom_call.1} parent=5 // pred_check_branch
        %296 = sbr.rel (%p293) target = $region52
      $region51: #{tpu_custom_call.1} parent=5 // pred_region
        %s297 = ssub.s32 %s21, 1
        %s298 = sand.u32 %s34, 1
        %s299 = scalar_lea.sflag [#allocation4], %s298
        %s300 = sand.u32 %s34, 1
        %s301 = smul.addr %s300, 8
        %s302 = scalar_lea.vmem [#allocation3], %s301
        // Predicated region
        $region53: #{tpu_custom_call.1} parent=51 // pred_check
          %p303 = pneg %p47
        $region54: #{tpu_custom_call.1} parent=51 // pred_check_branch
          %305 = sbr.rel (%p303) target = $region56
        $region55: #{tpu_custom_call.1} parent=51 // pred_region
          %307 = dma.done %s299, 128
        $region56: #{tpu_custom_call.1} parent=51 // pred_fallthru
          _
        // Predicated region
        $region57: #{tpu_custom_call.1} parent=51 // pred_check
          %p308 = pneg %p194
        $region58: #{tpu_custom_call.1} parent=51 // pred_check_branch
          %310 = sbr.rel (%p308) target = $region60
        $region59: #{tpu_custom_call.1} parent=51 // pred_region
          %312 = dma.done [#allocation7], 512
        $region60: #{tpu_custom_call.1} parent=51 // pred_fallthru
          _
        %s313 = sand.u32 %s34, 1
        %s314 = scalar_lea.sflag [#allocation4], %s313
        %s315 = sand.u32 %s34, 1
        %s316 = smul.addr %s315, 8
        %s317 = scalar_lea.vmem [#allocation3], %s316
        %p318 = pneg %p47
        %p319 = pneg %p44
        %p320 = pneg %p68
        %p321 = pneg %p65
        %p322 = pneg %p89
        %p323 = pneg %p86
        %p324 = pneg %p110
        %p325 = pneg %p107
        %p326 = pneg %p131
        %p327 = pneg %p128
        %p328 = pneg %p152
        %p329 = pneg %p149
        %p330 = pneg %p173
        %p331 = pneg %p170
        %p332 = pneg %p194
        %p333 = pneg %p191
        %p334 = pneg %p220
        %p335 = pneg %p217
        %s336 = sand.u32 %s207, 1
        %s337 = scalar_lea.sflag [#allocation5], %s336
        %s338 = sand.u32 %s207, 1
        %s339 = smul.addr %s338, 8
        %s340 = scalar_lea.vmem [#allocation8], %s339
        %v341 = vld [vmem:[%s302] sm:$0xff]
        %343 = vst [vmem:[#allocation1] ss:$2 sm:$0xff] %v341
        %v344 = vld.sshfl [vmem:[#allocation1 + $0x8] sm:$0xff pattern:$0x75316420]
        %345 = vrot.lane.b32.xlu0 %v344, 17
        %v346 = vpop.permute.xlu0 %345
        %348 = vst [vmem:[#allocation1] ss:$2 sm:$0xff] %v341
        %v349 = vld.sshfl [vmem:[#allocation1] sm:$0xff pattern:$0x75316420]
        %v350 = vld.sshfl [vmem:[#allocation1 + $0x8] sm:$0xff pattern:$0x75316420]
        %351 = vrot.lane.b32.xlu0 %v349, 17
        %v352 = vpop.permute.xlu0 %351
        %353 = vrot.lane.b32.xlu0 %v350, 17
        %v354 = vpop.permute.xlu0 %353
        %vm355 = vcmask 138240
        %v356 = vsel %vm355, %v352, %v354
        %v359 = vsel %vm355, %v346, %v352
        %v360 = vld [vmem:[#allocation6] ss:$8 sm:$0x3]
        %v362 = vperm.slane %v360, 0
        %v363 = vperm.slane %v360, 1
        %v366 = vmul.f32 %v359, %v362
        %v367 = vmul.f32 %v356, %v363
        %368 = vst [vmem:[#allocation2] sm:$0xf] %v366
        %369 = vst [vmem:[#allocation2 + $0x8] sm:$0xf] %v367
        %370 = vst [vmem:[#allocation1] ss:$2 sm:$0xff] %v341
        %v371 = vld.sshfl [vmem:[#allocation1 + $0x8] sm:$0xff pattern:$0x75316420]
        %372 = vrot.lane.b32.xlu0 %v371, 16
        %v373 = vpop.permute.xlu0 %372
        %375 = vst [vmem:[#allocation1] ss:$2 sm:$0xff] %v341
        %v376 = vld.sshfl [vmem:[#allocation1] sm:$0xff pattern:$0x75316420]
        %v377 = vld.sshfl [vmem:[#allocation1 + $0x8] sm:$0xff pattern:$0x75316420]
        %378 = vrot.lane.b32.xlu0 %v376, 16
        %v379 = vpop.permute.xlu0 %378
        %380 = vrot.lane.b32.xlu0 %v377, 16
        %v381 = vpop.permute.xlu0 %380
        %vm382 = vcmask 130048
        %v383 = vsel %vm382, %v379, %v381
        %v386 = vsel %vm382, %v373, %v379
        %s387 = scalar_lea.vmem [#allocation6], 1
        %v388 = vld [vmem:[%s387] ss:$8 sm:$0x3]
        %v390 = vperm.slane %v388, 0
        %v391 = vperm.slane %v388, 1
        %v394 = vmul.f32 %v386, %v390
        %v395 = vmul.f32 %v383, %v391
        %v398 = vrot.slane %v394, 4
        %v399 = vrot.slane %v395, 4
        %402 = vst [vmem:[#allocation2] sm:$0xf0] %v398
        %403 = vst [vmem:[#allocation2 + $0x8] sm:$0xf0] %v399
        %404 = vst [vmem:[#allocation1] ss:$2 sm:$0xff] %v341
        %v405 = vld.sshfl [vmem:[#allocation1 + $0x8] sm:$0xff pattern:$0x75316420]
        %406 = vrot.lane.b32.xlu0 %v405, 15
        %v407 = vpop.permute.xlu0 %406
        %409 = vst [vmem:[#allocation1] ss:$2 sm:$0xff] %v341
        %v410 = vld.sshfl [vmem:[#allocation1] sm:$0xff pattern:$0x75316420]
        %v411 = vld.sshfl [vmem:[#allocation1 + $0x8] sm:$0xff pattern:$0x75316420]
        %412 = vrot.lane.b32.xlu0 %v410, 15
        %v413 = vpop.permute.xlu0 %412
        %414 = vrot.lane.b32.xlu0 %v411, 15
        %v415 = vpop.permute.xlu0 %414
        %vm416 = vcmask 121856
        %v417 = vsel %vm416, %v413, %v415
        %v420 = vsel %vm416, %v407, %v413
        %s421 = scalar_lea.vmem [#allocation6], 2
        %v422 = vld [vmem:[%s421] ss:$8 sm:$0x3]
        %v424 = vperm.slane %v422, 0
        %v425 = vperm.slane %v422, 1
        %v428 = vmul.f32 %v420, %v424
        %v429 = vmul.f32 %v417, %v425
        %430 = vst [vmem:[#allocation2 + $0x10] sm:$0xf] %v428
        %431 = vst [vmem:[#allocation2 + $0x18] sm:$0xf] %v429
        %432 = vst [vmem:[#allocation1] ss:$2 sm:$0xff] %v341
        %v433 = vld.sshfl [vmem:[#allocation1 + $0x8] sm:$0xff pattern:$0x75316420]
        %434 = vrot.lane.b32.xlu0 %v433, 1
        %v435 = vpop.permute.xlu0 %434
        %437 = vst [vmem:[#allocation1] ss:$2 sm:$0xff] %v341
        %v438 = vld.sshfl [vmem:[#allocation1] sm:$0xff pattern:$0x75316420]
        %v439 = vld.sshfl [vmem:[#allocation1 + $0x8] sm:$0xff pattern:$0x75316420]
        %440 = vrot.lane.b32.xlu0 %v438, 1
        %v441 = vpop.permute.xlu0 %440
        %442 = vrot.lane.b32.xlu0 %v439, 1
        %v443 = vpop.permute.xlu0 %442
        %vm444 = vcmask 7168
        %v445 = vsel %vm444, %v441, %v443
        %v448 = vsel %vm444, %v435, %v441
        %s449 = scalar_lea.vmem [#allocation6], 3
        %v450 = vld [vmem:[%s449] ss:$8 sm:$0x3]
        %v452 = vperm.slane %v450, 0
        %v453 = vperm.slane %v450, 1
        %v456 = vmul.f32 %v448, %v452
        %v457 = vmul.f32 %v445, %v453
        %v460 = vrot.slane %v456, 4
        %v461 = vrot.slane %v457, 4
        %464 = vst [vmem:[#allocation2 + $0x10] sm:$0xf0] %v460
        %465 = vst [vmem:[#allocation2 + $0x18] sm:$0xf0] %v461
        %s466 = scalar_lea.vmem [#allocation6], 4
        %v467 = vld [vmem:[%s466] ss:$8 sm:$0x3]
        %v469 = vperm.slane %v467, 0
        %v470 = vperm.slane %v467, 1
        %v471 = vrot.slane %v470, 4
        %vm472 = vcmask 1043456
        %v473 = vsel %vm472, %v469, %v471
        %v475 = vmul.f32 %v341, %v473
        %477 = vst [vmem:[#allocation1] ss:$2 sm:$0xff] %v475
        %v478 = vld.sshfl [vmem:[#allocation1] sm:$0xff pattern:$0x75316420]
        %v479 = vld.sshfl [vmem:[#allocation1 + $0x8] sm:$0xff pattern:$0x75316420]
        %482 = vst [vmem:[#allocation2 + $0x20] sm:$0xf] %v478
        %483 = vst [vmem:[#allocation2 + $0x28] sm:$0xf] %v479
        %484 = vst [vmem:[#allocation1] ss:$2 sm:$0xff] %v341
        %v485 = vld.sshfl [vmem:[#allocation1] sm:$0xff pattern:$0x75316420]
        %v486 = vld.sshfl [vmem:[#allocation1 + $0x8] sm:$0xff pattern:$0x75316420]
        %487 = vrot.lane.b32.xlu0 %v485, 127
        %v488 = vpop.permute.xlu0 %487
        %489 = vrot.lane.b32.xlu0 %v486, 127
        %v490 = vpop.permute.xlu0 %489
        %vm491 = vcmask 1039360
        %v492 = vsel %vm491, %v488, %v490
        %495 = vst [vmem:[#allocation1] ss:$2 sm:$0xff] %v341
        %v496 = vld.sshfl [vmem:[#allocation1] sm:$0xff pattern:$0x75316420]
        %497 = vrot.lane.b32.xlu0 %v496, 127
        %v498 = vpop.permute.xlu0 %497
        %v500 = vsel %vm491, %v490, %v498
        %s501 = scalar_lea.vmem [#allocation6], 5
        %v502 = vld [vmem:[%s501] ss:$8 sm:$0x3]
        %v504 = vperm.slane %v502, 0
        %v505 = vperm.slane %v502, 1
        %v508 = vmul.f32 %v492, %v504
        %v509 = vmul.f32 %v500, %v505
        %v512 = vrot.slane %v508, 4
        %v513 = vrot.slane %v509, 4
        %516 = vst [vmem:[#allocation2 + $0x20] sm:$0xf0] %v512
        %517 = vst [vmem:[#allocation2 + $0x28] sm:$0xf0] %v513
        %518 = vst [vmem:[#allocation1] ss:$2 sm:$0xff] %v341
        %v519 = vld.sshfl [vmem:[#allocation1] sm:$0xff pattern:$0x75316420]
        %v520 = vld.sshfl [vmem:[#allocation1 + $0x8] sm:$0xff pattern:$0x75316420]
        %521 = vrot.lane.b32.xlu0 %v519, 113
        %v522 = vpop.permute.xlu0 %521
        %523 = vrot.lane.b32.xlu0 %v520, 113
        %v524 = vpop.permute.xlu0 %523
        %vm525 = vcmask 924672
        %v526 = vsel %vm525, %v522, %v524
        %529 = vst [vmem:[#allocation1] ss:$2 sm:$0xff] %v341
        %v530 = vld.sshfl [vmem:[#allocation1] sm:$0xff pattern:$0x75316420]
        %531 = vrot.lane.b32.xlu0 %v530, 113
        %v532 = vpop.permute.xlu0 %531
        %v534 = vsel %vm525, %v524, %v532
        %s535 = scalar_lea.vmem [#allocation6], 6
        %v536 = vld [vmem:[%s535] ss:$8 sm:$0x3]
        %v538 = vperm.slane %v536, 0
        %v539 = vperm.slane %v536, 1
        %v542 = vmul.f32 %v526, %v538
        %v543 = vmul.f32 %v534, %v539
        %544 = vst [vmem:[#allocation2 + $0x30] sm:$0xf] %v542
        %545 = vst [vmem:[#allocation2 + $0x38] sm:$0xf] %v543
        %546 = vst [vmem:[#allocation1] ss:$2 sm:$0xff] %v341
        %v547 = vld.sshfl [vmem:[#allocation1] sm:$0xff pattern:$0x75316420]
        %v548 = vld.sshfl [vmem:[#allocation1 + $0x8] sm:$0xff pattern:$0x75316420]
        %549 = vrot.lane.b32.xlu0 %v547, 112
        %v550 = vpop.permute.xlu0 %549
        %551 = vrot.lane.b32.xlu0 %v548, 112
        %v552 = vpop.permute.xlu0 %551
        %vm553 = vcmask 916480
        %v554 = vsel %vm553, %v550, %v552
        %557 = vst [vmem:[#allocation1] ss:$2 sm:$0xff] %v341
        %v558 = vld.sshfl [vmem:[#allocation1] sm:$0xff pattern:$0x75316420]
        %559 = vrot.lane.b32.xlu0 %v558, 112
        %v560 = vpop.permute.xlu0 %559
        %v562 = vsel %vm553, %v552, %v560
        %s563 = scalar_lea.vmem [#allocation6], 7
        %v564 = vld [vmem:[%s563] ss:$8 sm:$0x3]
        %v566 = vperm.slane %v564, 0
        %v567 = vperm.slane %v564, 1
        %v570 = vmul.f32 %v554, %v566
        %v571 = vmul.f32 %v562, %v567
        %v574 = vrot.slane %v570, 4
        %v575 = vrot.slane %v571, 4
        %578 = vst [vmem:[#allocation2 + $0x30] sm:$0xf0] %v574
        %579 = vst [vmem:[#allocation2 + $0x38] sm:$0xf0] %v575
        %580 = vst [vmem:[#allocation1] ss:$2 sm:$0xff] %v341
        %v581 = vld.sshfl [vmem:[#allocation1] sm:$0xff pattern:$0x75316420]
        %v582 = vld.sshfl [vmem:[#allocation1 + $0x8] sm:$0xff pattern:$0x75316420]
        %583 = vrot.lane.b32.xlu0 %v581, 111
        %v584 = vpop.permute.xlu0 %583
        %585 = vrot.lane.b32.xlu0 %v582, 111
        %v586 = vpop.permute.xlu0 %585
        %vm587 = vcmask 908288
        %v588 = vsel %vm587, %v584, %v586
        %591 = vst [vmem:[#allocation1] ss:$2 sm:$0xff] %v341
        %v592 = vld.sshfl [vmem:[#allocation1] sm:$0xff pattern:$0x75316420]
        %593 = vrot.lane.b32.xlu0 %v592, 111
        %v594 = vpop.permute.xlu0 %593
        %v596 = vsel %vm587, %v586, %v594
        %s597 = scalar_lea.vmem [#allocation6], 16
        %v598 = vld [vmem:[%s597] ss:$8 sm:$0x3]
        %v600 = vperm.slane %v598, 0
        %v601 = vperm.slane %v598, 1
        %v604 = vmul.f32 %v588, %v600
        %v605 = vmul.f32 %v596, %v601
        %606 = vst [vmem:[#allocation2 + $0x40] sm:$0xf] %v604
        %607 = vst [vmem:[#allocation2 + $0x48] sm:$0xf] %v605
        %v608 = vld [vmem:[%s1] sm:$0xf]
        %v609 = vld [vmem:[#allocation2] sm:$0xff]
        %v610 = vld [vmem:[#allocation2 + $0x8] sm:$0xff]
        %v611 = vld [vmem:[#allocation2 + $0x10] sm:$0xff]
        %v612 = vld [vmem:[#allocation2 + $0x18] sm:$0xff]
        %v613 = vld [vmem:[#allocation2 + $0x20] sm:$0xff]
        %v614 = vld [vmem:[#allocation2 + $0x28] sm:$0xff]
        %v615 = vld [vmem:[#allocation2 + $0x30] sm:$0xff]
        %v616 = vld [vmem:[#allocation2 + $0x38] sm:$0xff]
        %v617 = vld [vmem:[#allocation2 + $0x40] sm:$0xf]
        %v618 = vld [vmem:[#allocation2 + $0x48] sm:$0xf]
        %vm619 = vcmask 293888
        %v621 = vsel %vm619, %v608, 0
        %v624 = vsel %vm472, %v617, 0
        %v627 = vsel %vm472, %v618, 0
        %629 = vmatpush.msra.mxu0 0.0
        %630 = vmatpush.msra.mxu0 0.0
        %631 = vmatpush.msra.mxu0 0.0
        %632 = vmatpush.msra.mxu0 0.0
        %633 = vmatpush.msra.mxu0 0.0
        %634 = vmatpush.msra.mxu0 0.0
        %635 = vmatpush.msra.mxu0 0.0
        %636 = vmatpush.msra.mxu0 0.0
        %637 = vmatpush.msra.mxu0 0.0
        %638 = vmatpush.msra.mxu0 0.0
        %639 = vmatpush.msra.mxu0 0.0
        %640 = vmatpush.msra.mxu0 %v624
        %641 = vmatpush.msra.mxu0 %v615
        %642 = vmatpush.msra.mxu0 %v613
        %643 = vmatpush.msra.mxu0 %v611
        %644 = vmatpush.msra.mxu0 %v609
        %645 = vmatmul.f32.gmra.mxu0 %v621
        %v646 = vpop.f32.mrf.mxu0
        %v647 = vadd.f32 0.0, %v646
        %648 = vdwg.mxu0
        %649 = vmatpush.msra.mxu0 0.0
        %650 = vmatpush.msra.mxu0 0.0
        %651 = vmatpush.msra.mxu0 0.0
        %652 = vmatpush.msra.mxu0 0.0
        %653 = vmatpush.msra.mxu0 0.0
        %654 = vmatpush.msra.mxu0 0.0
        %655 = vmatpush.msra.mxu0 0.0
        %656 = vmatpush.msra.mxu0 0.0
        %657 = vmatpush.msra.mxu0 0.0
        %658 = vmatpush.msra.mxu0 0.0
        %659 = vmatpush.msra.mxu0 0.0
        %660 = vmatpush.msra.mxu0 %v627
        %661 = vmatpush.msra.mxu0 %v616
        %662 = vmatpush.msra.mxu0 %v614
        %663 = vmatpush.msra.mxu0 %v612
        %664 = vmatpush.msra.mxu0 %v610
        %665 = vmatmul.f32.gmra.mxu0 %v621
        %v666 = vpop.f32.mrf.mxu0
        %v667 = vadd.f32 0.0, %v666
        %668 = vdwg.mxu0
        %v669 = vld [vmem:[%s2] sm:$0xf]
        %671 = vset.pattern.permute.xlu0 0
        %672 = vperm.xlu0 %671, %v669
        %v673 = vpop.permute.xlu0 %672
        %v675 = vmul.f32 %v647, %v673
        %v676 = vmul.f32 %v667, %v673
        %v677 = vld [vmem:[%s3] sm:$0xf]
        %679 = vset.pattern.permute.xlu0 0
        %680 = vperm.xlu0 %679, %v677
        %v681 = vpop.permute.xlu0 %680
        %v683 = vadd.f32 %v675, %v681
        %v684 = vadd.f32 %v676, %v681
        %vm685 = vcmp.ge.f32.partialorder %v683, 0.0
        %vm686 = vcmp.ge.f32.partialorder %v684, 0.0
        %v687 = vmul.f32 %v683, 0.05
        %v688 = vmul.f32 %v684, 0.05
        %v689 = vsel %vm685, %v683, %v687
        %v690 = vsel %vm686, %v684, %v688
        %692 = vrot.lane.b32.xlu0 %v690, 17
        %v693 = vpop.permute.xlu0 %692
        %696 = vrot.lane.b32.xlu0 %v689, 17
        %v697 = vpop.permute.xlu0 %696
        %v698 = vsel %vm355, %v697, %v693
        %v701 = vsel %vm355, %v693, %v697
        %v702 = vld [vmem:[#allocation6] ss:$8 sm:$0x3]
        %v704 = vperm.slane %v702, 0
        %v705 = vperm.slane %v702, 1
        %v708 = vmul.f32 %v701, %v704
        %v709 = vmul.f32 %v698, %v705
        %710 = vst [vmem:[#allocation2] sm:$0xf] %v708
        %711 = vst [vmem:[#allocation2 + $0x8] sm:$0xf] %v709
        %712 = vrot.lane.b32.xlu0 %v690, 16
        %v713 = vpop.permute.xlu0 %712
        %715 = vrot.lane.b32.xlu0 %v689, 16
        %v716 = vpop.permute.xlu0 %715
        %v717 = vsel %vm382, %v716, %v713
        %v720 = vsel %vm382, %v713, %v716
        %v721 = vld [vmem:[%s387] ss:$8 sm:$0x3]
        %v723 = vperm.slane %v721, 0
        %v724 = vperm.slane %v721, 1
        %v727 = vmul.f32 %v720, %v723
        %v728 = vmul.f32 %v717, %v724
        %v731 = vrot.slane %v727, 4
        %v732 = vrot.slane %v728, 4
        %735 = vst [vmem:[#allocation2] sm:$0xf0] %v731
        %736 = vst [vmem:[#allocation2 + $0x8] sm:$0xf0] %v732
        %737 = vrot.lane.b32.xlu0 %v690, 15
        %v738 = vpop.permute.xlu0 %737
        %740 = vrot.lane.b32.xlu0 %v689, 15
        %v741 = vpop.permute.xlu0 %740
        %v742 = vsel %vm416, %v741, %v738
        %v745 = vsel %vm416, %v738, %v741
        %v746 = vld [vmem:[%s421] ss:$8 sm:$0x3]
        %v748 = vperm.slane %v746, 0
        %v749 = vperm.slane %v746, 1
        %v752 = vmul.f32 %v745, %v748
        %v753 = vmul.f32 %v742, %v749
        %754 = vst [vmem:[#allocation2 + $0x10] sm:$0xf] %v752
        %755 = vst [vmem:[#allocation2 + $0x18] sm:$0xf] %v753
        %756 = vrot.lane.b32.xlu0 %v690, 1
        %v757 = vpop.permute.xlu0 %756
        %759 = vrot.lane.b32.xlu0 %v689, 1
        %v760 = vpop.permute.xlu0 %759
        %v761 = vsel %vm444, %v760, %v757
        %v764 = vsel %vm444, %v757, %v760
        %v765 = vld [vmem:[%s449] ss:$8 sm:$0x3]
        %v767 = vperm.slane %v765, 0
        %v768 = vperm.slane %v765, 1
        %v771 = vmul.f32 %v764, %v767
        %v772 = vmul.f32 %v761, %v768
        %v775 = vrot.slane %v771, 4
        %v776 = vrot.slane %v772, 4
        %779 = vst [vmem:[#allocation2 + $0x10] sm:$0xf0] %v775
        %780 = vst [vmem:[#allocation2 + $0x18] sm:$0xf0] %v776
        %v781 = vld [vmem:[%s466] ss:$8 sm:$0x3]
        %v783 = vperm.slane %v781, 0
        %v784 = vperm.slane %v781, 1
        %v787 = vmul.f32 %v689, %v783
        %v788 = vmul.f32 %v690, %v784
        %789 = vst [vmem:[#allocation2 + $0x20] sm:$0xf] %v787
        %790 = vst [vmem:[#allocation2 + $0x28] sm:$0xf] %v788
        %791 = vrot.lane.b32.xlu0 %v689, 127
        %v792 = vpop.permute.xlu0 %791
        %793 = vrot.lane.b32.xlu0 %v690, 127
        %v794 = vpop.permute.xlu0 %793
        %v795 = vsel %vm491, %v792, %v794
        %v799 = vsel %vm491, %v794, %v792
        %v800 = vld [vmem:[%s501] ss:$8 sm:$0x3]
        %v802 = vperm.slane %v800, 0
        %v803 = vperm.slane %v800, 1
        %v806 = vmul.f32 %v795, %v802
        %v807 = vmul.f32 %v799, %v803
        %v810 = vrot.slane %v806, 4
        %v811 = vrot.slane %v807, 4
        %814 = vst [vmem:[#allocation2 + $0x20] sm:$0xf0] %v810
        %815 = vst [vmem:[#allocation2 + $0x28] sm:$0xf0] %v811
        %816 = vrot.lane.b32.xlu0 %v689, 113
        %v817 = vpop.permute.xlu0 %816
        %818 = vrot.lane.b32.xlu0 %v690, 113
        %v819 = vpop.permute.xlu0 %818
        %v820 = vsel %vm525, %v817, %v819
        %v824 = vsel %vm525, %v819, %v817
        %v825 = vld [vmem:[%s535] ss:$8 sm:$0x3]
        %v827 = vperm.slane %v825, 0
        %v828 = vperm.slane %v825, 1
        %v831 = vmul.f32 %v820, %v827
        %v832 = vmul.f32 %v824, %v828
        %833 = vst [vmem:[#allocation2 + $0x30] sm:$0xf] %v831
        %834 = vst [vmem:[#allocation2 + $0x38] sm:$0xf] %v832
        %835 = vrot.lane.b32.xlu0 %v689, 112
        %v836 = vpop.permute.xlu0 %835
        %837 = vrot.lane.b32.xlu0 %v690, 112
        %v838 = vpop.permute.xlu0 %837
        %v839 = vsel %vm553, %v836, %v838
        %v843 = vsel %vm553, %v838, %v836
        %v844 = vld [vmem:[%s563] ss:$8 sm:$0x3]
        %v846 = vperm.slane %v844, 0
        %v847 = vperm.slane %v844, 1
        %v850 = vmul.f32 %v839, %v846
        %v851 = vmul.f32 %v843, %v847
        %v854 = vrot.slane %v850, 4
        %v855 = vrot.slane %v851, 4
        %858 = vst [vmem:[#allocation2 + $0x30] sm:$0xf0] %v854
        %859 = vst [vmem:[#allocation2 + $0x38] sm:$0xf0] %v855
        %860 = vrot.lane.b32.xlu0 %v689, 111
        %v861 = vpop.permute.xlu0 %860
        %862 = vrot.lane.b32.xlu0 %v690, 111
        %v863 = vpop.permute.xlu0 %862
        %v864 = vsel %vm587, %v861, %v863
        %v868 = vsel %vm587, %v863, %v861
        %v869 = vld [vmem:[%s597] ss:$8 sm:$0x3]
        %v871 = vperm.slane %v869, 0
        %v872 = vperm.slane %v869, 1
        %v875 = vmul.f32 %v864, %v871
        %v876 = vmul.f32 %v868, %v872
        %877 = vst [vmem:[#allocation2 + $0x40] sm:$0xf] %v875
        %878 = vst [vmem:[#allocation2 + $0x48] sm:$0xf] %v876
        %v879 = vld [vmem:[%s4] sm:$0xf]
        %v880 = vld [vmem:[#allocation2] sm:$0xff]
        %v881 = vld [vmem:[#allocation2 + $0x8] sm:$0xff]
        %v882 = vld [vmem:[#allocation2 + $0x10] sm:$0xff]
        %v883 = vld [vmem:[#allocation2 + $0x18] sm:$0xff]
        %v884 = vld [vmem:[#allocation2 + $0x20] sm:$0xff]
        %v885 = vld [vmem:[#allocation2 + $0x28] sm:$0xff]
        %v886 = vld [vmem:[#allocation2 + $0x30] sm:$0xff]
        %v887 = vld [vmem:[#allocation2 + $0x38] sm:$0xff]
        %v888 = vld [vmem:[#allocation2 + $0x40] sm:$0xf]
        %v889 = vld [vmem:[#allocation2 + $0x48] sm:$0xf]
        %v891 = vsel %vm619, %v879, 0
        %v894 = vsel %vm472, %v888, 0
        %v897 = vsel %vm472, %v889, 0
        %899 = vmatpush.msra.mxu0 0.0
        %900 = vmatpush.msra.mxu0 0.0
        %901 = vmatpush.msra.mxu0 0.0
        %902 = vmatpush.msra.mxu0 0.0
        %903 = vmatpush.msra.mxu0 0.0
        %904 = vmatpush.msra.mxu0 0.0
        %905 = vmatpush.msra.mxu0 0.0
        %906 = vmatpush.msra.mxu0 0.0
        %907 = vmatpush.msra.mxu0 0.0
        %908 = vmatpush.msra.mxu0 0.0
        %909 = vmatpush.msra.mxu0 0.0
        %910 = vmatpush.msra.mxu0 %v894
        %911 = vmatpush.msra.mxu0 %v886
        %912 = vmatpush.msra.mxu0 %v884
        %913 = vmatpush.msra.mxu0 %v882
        %914 = vmatpush.msra.mxu0 %v880
        %915 = vmatmul.f32.gmra.mxu0 %v891
        %v916 = vpop.f32.mrf.mxu0
        %v917 = vadd.f32 0.0, %v916
        %918 = vdwg.mxu0
        %919 = vmatpush.msra.mxu0 0.0
        %920 = vmatpush.msra.mxu0 0.0
        %921 = vmatpush.msra.mxu0 0.0
        %922 = vmatpush.msra.mxu0 0.0
        %923 = vmatpush.msra.mxu0 0.0
        %924 = vmatpush.msra.mxu0 0.0
        %925 = vmatpush.msra.mxu0 0.0
        %926 = vmatpush.msra.mxu0 0.0
        %927 = vmatpush.msra.mxu0 0.0
        %928 = vmatpush.msra.mxu0 0.0
        %929 = vmatpush.msra.mxu0 0.0
        %930 = vmatpush.msra.mxu0 %v897
        %931 = vmatpush.msra.mxu0 %v887
        %932 = vmatpush.msra.mxu0 %v885
        %933 = vmatpush.msra.mxu0 %v883
        %934 = vmatpush.msra.mxu0 %v881
        %935 = vmatmul.f32.gmra.mxu0 %v891
        %v936 = vpop.f32.mrf.mxu0
        %v937 = vadd.f32 0.0, %v936
        %938 = vdwg.mxu0
        %v939 = vld [vmem:[%s5] sm:$0xf]
        %941 = vset.pattern.permute.xlu0 0
        %942 = vperm.xlu0 %941, %v939
        %v943 = vpop.permute.xlu0 %942
        %v945 = vmul.f32 %v917, %v943
        %v946 = vmul.f32 %v937, %v943
        %v947 = vld [vmem:[%s6] sm:$0xf]
        %949 = vset.pattern.permute.xlu0 0
        %950 = vperm.xlu0 %949, %v947
        %v951 = vpop.permute.xlu0 %950
        %v953 = vadd.f32 %v945, %v951
        %v954 = vadd.f32 %v946, %v951
        %955 = vst [vmem:[#allocation1] ss:$2 sm:$0xff] %v341
        %v956 = vld.sshfl [vmem:[#allocation1] sm:$0xff pattern:$0x75316420]
        %v957 = vld.sshfl [vmem:[#allocation1 + $0x8] sm:$0xff pattern:$0x75316420]
        %v960 = vadd.f32 %v953, %v956
        %v961 = vadd.f32 %v954, %v957
        %vm962 = vcmp.ge.f32.partialorder %v960, 0.0
        %vm963 = vcmp.ge.f32.partialorder %v961, 0.0
        %v964 = vmul.f32 %v960, 0.05
        %v965 = vmul.f32 %v961, 0.05
        %v966 = vsel %vm962, %v960, %v964
        %v967 = vsel %vm963, %v961, %v965
        %v970 = vrot.slane %v967, 4
        %v971 = vsel %vm472, %v966, %v970
        %973 = vst [vmem:[%s340] sm:$0xff] %v971
        %s974 = sand.u32 %s207, 1
        %s975 = scalar_lea.sflag [#allocation5], %s974
        %s976 = sand.u32 %s207, 1
        %s977 = smul.addr %s976, 8
        %s978 = scalar_lea.vmem [#allocation8], %s977
        // Predicated region
        $region61: #{tpu_custom_call.1} parent=51 // pred_check
          %p979 = pneg %p217
        $region62: #{tpu_custom_call.1} parent=51 // pred_check_branch
          %981 = sbr.rel (%p979) target = $region64
        $region63: #{tpu_custom_call.1} parent=51 // pred_region
          %983 = vsyncadd %s975, 0
          %s984 = smul.addr %s26, 2
          %s985 = smul.addr %s984, 4
          %s986 = scalar_lea.hbm %s8, %s985
          %s988 = sshll.u32 %s978, 4
          %s989 = int_to_ptr.vmem [resolvable:$true] %s988
          %s990 = sshll.u32 %s986, 4
          %s991 = int_to_ptr.hbm [resolvable:$true] %s990
          %993 = dma.vmem_to_hbm [thread:$0]  %s989, 128, %s991, %s975
        $region64: #{tpu_custom_call.1} parent=51 // pred_fallthru
          _
      $region52: #{tpu_custom_call.1} parent=5 // pred_fallthru
        _
      %p994 = scmp.le.s32.totalorder 2, %s21
      // Predicated region
      $region65: #{tpu_custom_call.1} parent=5 // pred_check
        %p995 = pneg %p994
      $region66: #{tpu_custom_call.1} parent=5 // pred_check_branch
        %997 = sbr.rel (%p995) target = $region68
      $region67: #{tpu_custom_call.1} parent=5 // pred_region
        %s998 = ssub.s32 %s21, 2
        // Predicated region
        $region69: #{tpu_custom_call.1} parent=67 // pred_check
          %p999 = pneg %p223
        $region70: #{tpu_custom_call.1} parent=67 // pred_check_branch
          %1001 = sbr.rel (%p999) target = $region72
        $region71: #{tpu_custom_call.1} parent=67 // pred_region
          %s1002 = sand.u32 %s208, 1
          %s1003 = scalar_lea.sflag [#allocation5], %s1002
          %s1004 = sand.u32 %s208, 1
          %s1005 = smul.addr %s1004, 8
          %s1006 = scalar_lea.vmem [#allocation8], %s1005
          %1008 = dma.done %s1003, 128
        $region72: #{tpu_custom_call.1} parent=67 // pred_fallthru
          _
      $region68: #{tpu_custom_call.1} parent=5 // pred_fallthru
        _
    $region6: #{tpu_custom_call.1} parent=1 // loop_footer
      %s25 = sadd.s32 1, %s21
    $region7: #{tpu_custom_call.1} parent=1 // loop_footer_branch
      %20 = sbr.rel target = $region3
    $region8: #{tpu_custom_call.1} parent=1 // loop_exit
      _
    %1009 = vsyncpa [#allocation4], 1
    %s1010 = scalar_lea.sflag [#allocation4], 1
    %1011 = vsyncpa %s1010, 1
    %1012 = vsyncpa [#allocation7], 1
    %1013 = vsyncpa [#allocation5], 1
    %s1014 = scalar_lea.sflag [#allocation5], 1
    %1015 = vsyncpa %s1014, 1

</llo_original>
